<compile_context>
chip_gen: v6e
topology: v6e:2x2x1
jax: 0.10.0
libtpu: 0.0.40
codegen_flags: <defaults>
</compile_context>

<pallas_src>
import jax
import jax.numpy as jnp
from jax.experimental import pallas as pl
from jax.experimental.pallas import tpu as pltpu


def _nearest_up2_kernel(x_ref, d_ref, o_ref):
    # x_ref: (1, TR, W)   input row tile (rows are flattened (c, h) pairs)
    # d_ref: (W, 4W)      one-hot duplication matrix
    # o_ref: (1, TR, 4W)  each input row -> its two duplicated output rows, contiguous
    y = jnp.dot(
        x_ref[0],
        d_ref[...],
        preferred_element_type=jnp.float32,
        precision=jax.lax.Precision.HIGHEST,  # exact copy through the MXU
    )
    o_ref[0] = y.astype(o_ref.dtype)


def _make_dup_matrix(w, dtype):
    # out column m = dr*2W + 2j + dj  pulls input column j = (m % 2W) // 2
    cols = jnp.arange(4 * w)
    src = (cols % (2 * w)) // 2
    return (src[None, :] == jnp.arange(w)[:, None]).astype(dtype)


def upsample_nearest_2x(x):
    """Nearest-neighbor 2x spatial upsample of an NCHW tensor (PyTorch `Up`)."""
    n, c, h, w = x.shape
    r = c * h
    tr = r if r <= 512 else 512          # row tile; 512 is a multiple of 8 (sublane)
    d2 = _make_dup_matrix(w, x.dtype)

    x3 = x.reshape(n, r, w)              # free view: (N, C*H, W)

    out3 = pl.pallas_call(
        _nearest_up2_kernel,
        out_shape=jax.ShapeDtypeStruct((n, r, 4 * w), x.dtype),
        grid_spec=pltpu.PrefetchScalarGridSpec(
            num_scalar_prefetch=0,
            grid=(n, pl.cdiv(r, tr)),
            in_specs=[
                pl.BlockSpec((1, tr, w), lambda b, t: (b, t, 0)),
                pl.BlockSpec((w, 4 * w), lambda b, t: (0, 0)),
            ],
            out_specs=pl.BlockSpec((1, tr, 4 * w), lambda b, t: (b, t, 0)),
        ),
        compiler_params=pltpu.CompilerParams(
            dimension_semantics=("parallel", "parallel"),
        ),
    )(x3, d2)

    # free view back to NCHW: row 2r+dr of channel c == row (2i+dr) of output image
    return out3.reshape(n, c, 2 * h, 2 * w)


if __name__ == "__main__":
    key = jax.random.PRNGKey(0)
    N, C, H, W = 2, 4, 16, 16
    x = jax.random.normal(key, (N, C, H, W), jnp.float32)

    fwd = jax.jit(upsample_nearest_2x)
    y = fwd(x)
    jax.block_until_ready(y)

    assert y.shape == (N, C, 2 * H, 2 * W), y.shape
    # reference: exact nearest-neighbor duplication
    ref = jnp.repeat(jnp.repeat(x, 2, axis=2), 2, axis=3)
    assert jnp.all(jnp.isfinite(y))
    assert jnp.allclose(y, ref, rtol=1e-6, atol=1e-6)
    print("KERNEL_OK")
</pallas_src>

<mosaic_0001>
module attributes {stable_mosaic.version = 11 : i64} {
  func.func @_nearest_up2_kernel(%arg0: i32, %arg1: i32, %arg2: memref<1x64x16xf32, #tpu.memory_space<vmem>>, %arg3: memref<16x64xf32, #tpu.memory_space<vmem>>, %arg4: memref<1x64x64xf32, #tpu.memory_space<vmem>>) attributes {dimension_semantics = [#tpu.dimension_semantics<parallel>, #tpu.dimension_semantics<parallel>], iteration_bounds = array<i64: 2, 1>, scalar_prefetch = 0 : i64, scratch_operands = 0 : i64, tpu.core_type = #tpu.core_type<tc>, window_params = [{transform_indices = @transform_0, window_bounds = array<i64: 1, 64, 16>}, {pipeline_mode = #tpu.pipeline_mode<synchronous>, transform_indices = @transform_1, window_bounds = array<i64: 16, 64>}, {transform_indices = @transform_2, window_bounds = array<i64: 1, 64, 64>}]} {
    %c0 = arith.constant 0 : index
    %c0_0 = arith.constant 0 : index
    %c0_1 = arith.constant 0 : index
    %0 = vector.load %arg2[%c0, %c0_0, %c0_1] : memref<1x64x16xf32, #tpu.memory_space<vmem>>, vector<1x64x16xf32>
    %1 = vector.shape_cast %0 : vector<1x64x16xf32> to vector<64x16xf32>
    %c0_2 = arith.constant 0 : index
    %c0_3 = arith.constant 0 : index
    %2 = vector.load %arg3[%c0_2, %c0_3] : memref<16x64xf32, #tpu.memory_space<vmem>>, vector<16x64xf32>
    %cst = arith.constant dense<0.000000e+00> : vector<64x64xf32>
    %3 = tpu.matmul %1, %2, %cst {dimension_numbers = #tpu.dot_dimension_numbers<[1], [0], [0], [1], [0, 0, 1, 1], [], []>, precision = #tpu.contract_precision<fp32>} : vector<64x16xf32>, vector<16x64xf32>, vector<64x64xf32> -> vector<64x64xf32>
    %c0_4 = arith.constant 0 : index
    %c0_5 = arith.constant 0 : index
    %c0_6 = arith.constant 0 : index
    %4 = vector.load %arg4[%c0_4, %c0_5, %c0_6] : memref<1x64x64xf32, #tpu.memory_space<vmem>>, vector<1x64x64xf32>
    %5 = vector.shape_cast %4 : vector<1x64x64xf32> to vector<64x64xf32>
    %6 = vector.shape_cast %3 : vector<64x64xf32> to vector<1x64x64xf32>
    tpu.vector_store %arg4[%c0_4, %c0_5, %c0_6], %6 {strides = array<i32>} : memref<1x64x64xf32, #tpu.memory_space<vmem>>, vector<1x64x64xf32>,
    return
  }
  func.func @transform_0(%arg0: i32, %arg1: i32) -> (i32, i32, i32) {
    %c0_i32 = arith.constant 0 : i32
    %c0_i32_0 = arith.constant 0 : i32
    return %arg0, %arg1, %c0_i32 : i32, i32, i32
  }
  func.func @transform_1(%arg0: i32, %arg1: i32) -> (i32, i32) {
    %c0_i32 = arith.constant 0 : i32
    %c0_i32_0 = arith.constant 0 : i32
    %c0_i32_1 = arith.constant 0 : i32
    return %c0_i32, %c0_i32_0 : i32, i32
  }
  func.func @transform_2(%arg0: i32, %arg1: i32) -> (i32, i32, i32) {
    %c0_i32 = arith.constant 0 : i32
    %c0_i32_0 = arith.constant 0 : i32
    return %arg0, %arg1, %c0_i32 : i32, i32, i32
  }
}

</mosaic_0001>

<llo_original>
// kernel: upsample_nearest_2x.1
$region0: #{upsample_nearest_2x.1}
  #allocation0 [shape = 'u32[]', space=smem, size = 0x4, offset = 0x4, fixed_abs, tag = 'smem constant byte address 0x4 - core index']
  #allocation1 [shape = 'u32[144,128]{1,0:T(1,128)}', space=vmem, size = 0x12000, scoped, tag = 'internal scratch']
  %s0 = inlined_call_operand.hbm [shape: f32[2,64,16], index: 0, kind: input, shape index: {}]
  %s1 = inlined_call_operand.vmem [shape: f32[16,64], index: 1, kind: input, shape index: {}]
  %s2 = inlined_call_operand.vmem [shape: f32[2,64,64], index: 2, kind: output, shape index: {}]
  %s3 = sld [smem:[#allocation0]]
  $region45: #{upsample_nearest_2x.1} parent=0
    _
  %s5 = ssub.s32 1, %s3
  %s6 = scalar_select 0, %s5, %s3
  $region1: #{upsample_nearest_2x.1} parent=0
    #allocation2 [shape = 'u8[65536]{0}', space=vmem, size = 0x10000, scoped, tag = 'input window, operand 0']
    #allocation3 [shape = 's32[2]{0}', space=sflag, size = 0x8, scoped, tag = 'scoped memory for upsample_nearest_2x.1']
    %7 = vsyncpa [#allocation3], 0
    %s8 = scalar_lea.sflag [#allocation3], 1
    %9 = vsyncpa %s8, 0
    loop: start=0, step=1, limit=4
    $region2: #{upsample_nearest_2x.1} parent=1 // loop_pre_header
      _
    $region3: #{upsample_nearest_2x.1} parent=1 // loop_header
      %s11 = sphi 0, %s15
      %p12 = scmp.ge.s32.totalorder %s11, 4
      %s18 = sphi 0, %s30
      %s19 = sphi 0, %s26
      %s20 = sphi 0, %s18
      %s21 = sphi 0, %s19
      %s22 = sphi 0, %s20
      %s23 = sphi 0, %s21
      %s35 = sphi 0, %s37
      %s38 = sphi 0, %s35
      %s39 = sphi 0, %s38
      %s55 = sphi 0, %s39
      %s59 = sphi 0, %s59
      %s61 = sphi 0, %s59
      %s62 = sphi 0, %s61
      %s76 = sphi 0, %s62
      %s84 = sphi 0, %s86
      %s87 = sphi 0, %s84
      %s88 = sphi 0, %s87
      %s104 = sphi 0, %s88
    $region4: #{upsample_nearest_2x.1} parent=1 // loop_header_branch
      %14 = sbr.rel (%p12) target = $region8
    $region5: #{upsample_nearest_2x.1} parent=1 // loop_body
      %s16 = ssub.s32 %s11, 1
      %s17 = ssub.s32 %s11, 2
      %s24 = sadd.s32 1, %s19
      %p25 = scmp.ge.s32.totalorder %s24, 1
      %s26 = scalar_select %p25, 0, %s24
      %s27 = sadd.s32 1, %s18
      %s28 = scalar_select %p25, %s27, %s18
      %p29 = scmp.ge.s32.totalorder %s28, 2
      %s30 = scalar_select %p29, 0, %s28
      %s31 = ssub.s32 %s18, %s30
      %s32 = ssub.s32 %s19, %s26
      %s33 = sor.u32 %s31, %s32
      %p34 = scmp.eq.s32.totalorder %s33, 0
      %s36 = sadd.s32 %s35, 1
      %s37 = scalar_select %p34, %s35, %s36
      %p40 = pneg %p34
      %p41 = scmp.eq.s32.totalorder %s11, 1
      %p42 = por %p40, %p41
      %p43 = scmp.ne.s32.totalorder %s35, %s38
      %p44 = scmp.eq.s32.totalorder %s11, 0
      %p45 = por %p43, %p44
      %p46 = scmp.ne.s32.totalorder %s35, %s38
      %p47 = scmp.eq.s32.totalorder %s16, 1
      %p48 = por %p46, %p47
      %p49 = scmp.ne.s32.totalorder %s38, %s39
      %p50 = scmp.eq.s32.totalorder %s16, 0
      %p51 = por %p49, %p50
      %p52 = scmp.ne.s32.totalorder %s38, %s39
      %p53 = scmp.eq.s32.totalorder %s17, 1
      %p54 = por %p52, %p53
      %p56 = scmp.ne.s32.totalorder %s39, %s55
      %p57 = scmp.eq.s32.totalorder %s17, 0
      %p58 = por %p56, %p57
      %s60 = sadd.s32 %s59, 1
      %p63 = scmp.eq.s32.totalorder %s11, 1
      %p64 = scmp.ne.s32.totalorder %s59, %s61
      %p65 = scmp.eq.s32.totalorder %s11, 0
      %p66 = por %p64, %p65
      %p67 = scmp.ne.s32.totalorder %s59, %s61
      %p68 = scmp.eq.s32.totalorder %s16, 1
      %p69 = por %p67, %p68
      %p70 = scmp.ne.s32.totalorder %s61, %s62
      %p71 = scmp.eq.s32.totalorder %s16, 0
      %p72 = por %p70, %p71
      %p73 = scmp.ne.s32.totalorder %s61, %s62
      %p74 = scmp.eq.s32.totalorder %s17, 1
      %p75 = por %p73, %p74
      %p77 = scmp.ne.s32.totalorder %s62, %s76
      %p78 = scmp.eq.s32.totalorder %s17, 0
      %p79 = por %p77, %p78
      %s80 = ssub.s32 %s18, %s30
      %s81 = ssub.s32 %s19, %s26
      %s82 = sor.u32 %s80, %s81
      %p83 = scmp.eq.s32.totalorder %s82, 0
      %s85 = sadd.s32 %s84, 1
      %s86 = scalar_select %p83, %s84, %s85
      %p89 = pneg %p83
      %p90 = scmp.eq.s32.totalorder %s11, 1
      %p91 = por %p89, %p90
      %p92 = scmp.ne.s32.totalorder %s84, %s87
      %p93 = scmp.eq.s32.totalorder %s11, 0
      %p94 = por %p92, %p93
      %p95 = scmp.ne.s32.totalorder %s84, %s87
      %p96 = scmp.eq.s32.totalorder %s16, 1
      %p97 = por %p95, %p96
      %p98 = scmp.ne.s32.totalorder %s87, %s88
      %p99 = scmp.eq.s32.totalorder %s16, 0
      %p100 = por %p98, %p99
      %p101 = scmp.ne.s32.totalorder %s87, %s88
      %p102 = scmp.eq.s32.totalorder %s17, 1
      %p103 = por %p101, %p102
      %p105 = scmp.ne.s32.totalorder %s88, %s104
      %p106 = scmp.eq.s32.totalorder %s17, 0
      %p107 = por %p105, %p106
      %p108 = scmp.le.s32.totalorder 1, %s11
      %p109 = scmp.lt.s32.totalorder %s11, 3
      %p110 = pnand %p108, %p109
      %p111 = pneg %p110
      // Predicated region
      $region9: #{upsample_nearest_2x.1} parent=5 // pred_check
        _
      $region10: #{upsample_nearest_2x.1} parent=5 // pred_check_branch
        %113 = sbr.rel (%p110) target = $region12
      $region11: #{upsample_nearest_2x.1} parent=5 // pred_region
        %s114 = ssub.s32 %s11, 1
        // Predicated region
        $region13: #{upsample_nearest_2x.1} parent=11 // pred_check
          %p115 = pneg %p72
        $region14: #{upsample_nearest_2x.1} parent=11 // pred_check_branch
          %117 = sbr.rel (%p115) target = $region16
        $region15: #{upsample_nearest_2x.1} parent=11 // pred_region
          _
        $region16: #{upsample_nearest_2x.1} parent=11 // pred_fallthru
          _
      $region12: #{upsample_nearest_2x.1} parent=5 // pred_fallthru
        _
      %p118 = scmp.lt.s32.totalorder %s11, 2
      // Predicated region
      $region17: #{upsample_nearest_2x.1} parent=5 // pred_check
        %p119 = pneg %p118
      $region18: #{upsample_nearest_2x.1} parent=5 // pred_check_branch
        %121 = sbr.rel (%p119) target = $region20
      $region19: #{upsample_nearest_2x.1} parent=5 // pred_region
        // Predicated region
        $region21: #{upsample_nearest_2x.1} parent=19 // pred_check
          %p122 = pneg %p45
        $region22: #{upsample_nearest_2x.1} parent=19 // pred_check_branch
          %124 = sbr.rel (%p122) target = $region24
        $region23: #{upsample_nearest_2x.1} parent=19 // pred_region
          %s125 = sand.u32 %s35, 1
          %s126 = scalar_lea.sflag [#allocation3], %s125
          %s127 = sand.u32 %s35, 1
          %s128 = smul.addr %s127, 64
          %s129 = scalar_lea.vmem [#allocation2], %s128
          %s130 = smul.u32 8, %s19
          %s132 = ssub.s32 1024, 1024
          %133 = vsyncadd %s126, %s132
          %s134 = smul.addr %s18, 8
          %s135 = sadd.s32 %s130, %s134
          %s136 = smul.addr %s135, 128
          %s137 = scalar_lea.hbm %s0, %s136
          %s138 = sshll.u32 %s129, 4
          %s139 = int_to_ptr.vmem [resolvable:$true] %s138
          %144 = dma.hbm_to_vmem [thread:$0]  %s137, 1024, %s139, %s126, 128, 128, 8
        $region24: #{upsample_nearest_2x.1} parent=19 // pred_fallthru
          _
      $region20: #{upsample_nearest_2x.1} parent=5 // pred_fallthru
        _
      %p145 = scmp.le.s32.totalorder 1, %s11
      %p146 = scmp.lt.s32.totalorder %s11, 3
      %p147 = pnand %p145, %p146
      %p148 = pneg %p147
      // Predicated region
      $region25: #{upsample_nearest_2x.1} parent=5 // pred_check
        _
      $region26: #{upsample_nearest_2x.1} parent=5 // pred_check_branch
        %150 = sbr.rel (%p147) target = $region28
      $region27: #{upsample_nearest_2x.1} parent=5 // pred_region
        %s151 = ssub.s32 %s11, 1
        %s152 = sand.u32 %s38, 1
        %s153 = scalar_lea.sflag [#allocation3], %s152
        %s154 = sand.u32 %s38, 1
        %s155 = smul.addr %s154, 64
        %s156 = scalar_lea.vmem [#allocation2], %s155
        // Predicated region
        $region29: #{upsample_nearest_2x.1} parent=27 // pred_check
          %p157 = pneg %p51
        $region30: #{upsample_nearest_2x.1} parent=27 // pred_check_branch
          %159 = sbr.rel (%p157) target = $region32
        $region31: #{upsample_nearest_2x.1} parent=27 // pred_region
          %160 = dma.done %s153, 1024
        $region32: #{upsample_nearest_2x.1} parent=27 // pred_fallthru
          _
        %s161 = sand.u32 %s38, 1
        %s162 = scalar_lea.sflag [#allocation3], %s161
        %s163 = sand.u32 %s38, 1
        %s164 = smul.addr %s163, 64
        %s165 = scalar_lea.vmem [#allocation2], %s164
        %p166 = pneg %p51
        %p167 = pneg %p48
        %p168 = pneg %p72
        %p169 = pneg %p69
        %p170 = pneg %p100
        %p171 = pneg %p97
        %s172 = smul.u32 8, %s21
        %p173 = scmp.lt.s32.totalorder %s20, 1
        %s174 = scalar_select %p173, %s20, 1
        %p175 = scmp.lt.s32.totalorder %s172, 7
        %s176 = scalar_select %p175, %s172, 7
        %s177 = smul.addr %s174, 8
        %s178 = sadd.s32 %s176, %s177
        %s179 = smul.addr %s178, 8
        %s180 = scalar_lea.vmem %s2, %s179
        %s181 = smul.u32 8, %s21
        %s182 = smul.u32 8, %s21
        %p183 = scmp.lt.s32.totalorder %s20, 1
        %s184 = scalar_select %p183, %s20, 1
        %p185 = scmp.lt.s32.totalorder %s182, 7
        %s186 = scalar_select %p185, %s182, 7
        %s187 = smul.addr %s184, 8
        %s188 = sadd.s32 %s186, %s187
        %s189 = smul.addr %s188, 8
        %s190 = scalar_lea.vmem %s2, %s189
        %s191 = smul.u32 8, %s21
        %v192 = vld [vmem:[%s156] sm:$0xff]
        %v193 = vld [vmem:[%s156 + $0x8] sm:$0xff]
        %v194 = vld [vmem:[%s156 + $0x10] sm:$0xff]
        %v195 = vld [vmem:[%s156 + $0x18] sm:$0xff]
        %v196 = vld [vmem:[%s156 + $0x20] sm:$0xff]
        %v197 = vld [vmem:[%s156 + $0x28] sm:$0xff]
        %v198 = vld [vmem:[%s156 + $0x30] sm:$0xff]
        %v199 = vld [vmem:[%s156 + $0x38] sm:$0xff]
        %v200 = vld [vmem:[%s1] sm:$0xff]
        %v201 = vld [vmem:[%s1 + $0x8] sm:$0xff]
        %vm202 = vcmask 130048
        %v204 = vsel %vm202, %v192, 0
        %v207 = vsel %vm202, %v193, 0
        %v210 = vsel %vm202, %v194, 0
        %v213 = vsel %vm202, %v195, 0
        %v216 = vsel %vm202, %v196, 0
        %v219 = vsel %vm202, %v197, 0
        %v222 = vsel %vm202, %v198, 0
        %v225 = vsel %vm202, %v199, 0
        %227 = vmatprep.subr.mxu0 0.0
        %228 = vmatpush1.msra.mxu0 0.0
        %229 = vmatprep.subr.mxu0 0.0
        %230 = vmatpush1.msra.mxu0 0.0
        %231 = vmatprep.subr.mxu0 0.0
        %232 = vmatpush1.msra.mxu0 0.0
        %233 = vmatprep.subr.mxu0 0.0
        %234 = vmatpush1.msra.mxu0 0.0
        %235 = vmatprep.subr.mxu0 0.0
        %236 = vmatpush1.msra.mxu0 0.0
        %237 = vmatprep.subr.mxu0 0.0
        %238 = vmatpush1.msra.mxu0 0.0
        %239 = vmatprep.subr.mxu0 0.0
        %240 = vmatpush1.msra.mxu0 0.0
        %241 = vmatprep.subr.mxu0 0.0
        %242 = vmatpush1.msra.mxu0 0.0
        %243 = vmatprep.subr.mxu0 0.0
        %244 = vmatpush1.msra.mxu0 0.0
        %245 = vmatprep.subr.mxu0 0.0
        %246 = vmatpush1.msra.mxu0 0.0
        %247 = vmatprep.subr.mxu0 0.0
        %248 = vmatpush1.msra.mxu0 0.0
        %249 = vmatprep.subr.mxu0 0.0
        %250 = vmatpush1.msra.mxu0 0.0
        %251 = vmatprep.subr.mxu0 0.0
        %252 = vmatpush1.msra.mxu0 0.0
        %253 = vmatprep.subr.mxu0 0.0
        %254 = vmatpush1.msra.mxu0 0.0
        %255 = vmatprep.subr.mxu0 0.0
        %v256 = vand.u32 %v201, 4294901760
        %257 = vmatpush1.msra.mxu0 %v256
        %258 = vmatprep.subr.mxu0 0.0
        %v259 = vand.u32 %v200, 4294901760
        %260 = vmatpush1.msra.mxu0 %v259
        %261 = vmatprep.subr.mxu0 0.0
        %262 = vmatpush2.msra.mxu0 0.0
        %263 = vmatprep.subr.mxu0 0.0
        %264 = vmatpush2.msra.mxu0 0.0
        %265 = vmatprep.subr.mxu0 0.0
        %266 = vmatpush2.msra.mxu0 0.0
        %267 = vmatprep.subr.mxu0 0.0
        %268 = vmatpush2.msra.mxu0 0.0
        %269 = vmatprep.subr.mxu0 0.0
        %270 = vmatpush2.msra.mxu0 0.0
        %271 = vmatprep.subr.mxu0 0.0
        %272 = vmatpush2.msra.mxu0 0.0
        %273 = vmatprep.subr.mxu0 0.0
        %274 = vmatpush2.msra.mxu0 0.0
        %275 = vmatprep.subr.mxu0 0.0
        %276 = vmatpush2.msra.mxu0 0.0
        %277 = vmatprep.subr.mxu0 0.0
        %278 = vmatpush2.msra.mxu0 0.0
        %279 = vmatprep.subr.mxu0 0.0
        %280 = vmatpush2.msra.mxu0 0.0
        %281 = vmatprep.subr.mxu0 0.0
        %282 = vmatpush2.msra.mxu0 0.0
        %283 = vmatprep.subr.mxu0 0.0
        %284 = vmatpush2.msra.mxu0 0.0
        %285 = vmatprep.subr.mxu0 0.0
        %286 = vmatpush2.msra.mxu0 0.0
        %287 = vmatprep.subr.mxu0 0.0
        %288 = vmatpush2.msra.mxu0 0.0
        %289 = vmatprep.subr.mxu0 0.0
        %290 = vmatpush2.msra.mxu0 0.0
        %291 = vmatprep.subr.mxu0 0.0
        %292 = vmatpush2.msra.mxu0 0.0
        %293 = vmatprep.mubr.f32.mxu0 0.0
        %v294 = vand.u32 %v204, 4294901760
        %v295 = vsub.f32 %v204, %v294
        %v296 = vand.u32 %v295, 4294901760
        %v297 = vsub.f32 %v295, %v296
        %v298 = vand.u32 %v297, 4294901760
        %299 = vmatmul.mubr.f32.gmra.mxu0 %v298
        %v300 = vpop.f32.mrf.mxu0
        %v301 = vadd.f32 0.0, %v300
        %v302 = vpop.f32.mrf.mxu0
        %303 = vmatprep.mubr.f32.mxu0 0.0
        %v304 = vand.u32 %v207, 4294901760
        %v305 = vsub.f32 %v207, %v304
        %v306 = vand.u32 %v305, 4294901760
        %v307 = vsub.f32 %v305, %v306
        %v308 = vand.u32 %v307, 4294901760
        %309 = vmatmul.mubr.f32.gmra.mxu0 %v308
        %v310 = vpop.f32.mrf.mxu0
        %v311 = vadd.f32 0.0, %v310
        %v312 = vpop.f32.mrf.mxu0
        %313 = vmatprep.mubr.f32.mxu0 0.0
        %v314 = vand.u32 %v210, 4294901760
        %v315 = vsub.f32 %v210, %v314
        %v316 = vand.u32 %v315, 4294901760
        %v317 = vsub.f32 %v315, %v316
        %v318 = vand.u32 %v317, 4294901760
        %319 = vmatmul.mubr.f32.gmra.mxu0 %v318
        %v320 = vpop.f32.mrf.mxu0
        %v321 = vadd.f32 0.0, %v320
        %v322 = vpop.f32.mrf.mxu0
        %323 = vmatprep.mubr.f32.mxu0 0.0
        %v324 = vand.u32 %v213, 4294901760
        %v325 = vsub.f32 %v213, %v324
        %v326 = vand.u32 %v325, 4294901760
        %v327 = vsub.f32 %v325, %v326
        %v328 = vand.u32 %v327, 4294901760
        %329 = vmatmul.mubr.f32.gmra.mxu0 %v328
        %v330 = vpop.f32.mrf.mxu0
        %v331 = vadd.f32 0.0, %v330
        %v332 = vpop.f32.mrf.mxu0
        %333 = vmatprep.mubr.f32.mxu0 0.0
        %v334 = vand.u32 %v216, 4294901760
        %v335 = vsub.f32 %v216, %v334
        %v336 = vand.u32 %v335, 4294901760
        %v337 = vsub.f32 %v335, %v336
        %v338 = vand.u32 %v337, 4294901760
        %339 = vmatmul.mubr.f32.gmra.mxu0 %v338
        %v340 = vpop.f32.mrf.mxu0
        %v341 = vadd.f32 0.0, %v340
        %v342 = vpop.f32.mrf.mxu0
        %343 = vmatprep.mubr.f32.mxu0 0.0
        %v344 = vand.u32 %v219, 4294901760
        %v345 = vsub.f32 %v219, %v344
        %v346 = vand.u32 %v345, 4294901760
        %v347 = vsub.f32 %v345, %v346
        %v348 = vand.u32 %v347, 4294901760
        %349 = vmatmul.mubr.f32.gmra.mxu0 %v348
        %v350 = vpop.f32.mrf.mxu0
        %v351 = vadd.f32 0.0, %v350
        %v352 = vpop.f32.mrf.mxu0
        %353 = vmatprep.mubr.f32.mxu0 0.0
        %v354 = vand.u32 %v222, 4294901760
        %v355 = vsub.f32 %v222, %v354
        %v356 = vand.u32 %v355, 4294901760
        %v357 = vsub.f32 %v355, %v356
        %v358 = vand.u32 %v357, 4294901760
        %359 = vmatmul.mubr.f32.gmra.mxu0 %v358
        %v360 = vpop.f32.mrf.mxu0
        %v361 = vadd.f32 0.0, %v360
        %v362 = vpop.f32.mrf.mxu0
        %363 = vmatprep.mubr.f32.mxu0 0.0
        %v364 = vand.u32 %v225, 4294901760
        %v365 = vsub.f32 %v225, %v364
        %v366 = vand.u32 %v365, 4294901760
        %v367 = vsub.f32 %v365, %v366
        %v368 = vand.u32 %v367, 4294901760
        %369 = vmatmul.mubr.f32.gmra.mxu0 %v368
        %v370 = vpop.f32.mrf.mxu0
        %v371 = vadd.f32 0.0, %v370
        %v372 = vpop.f32.mrf.mxu0
        %373 = vdwg.mxu0
        %374 = vmatprep.subr.mxu0 0.0
        %375 = vmatpush1.msra.mxu0 0.0
        %376 = vmatprep.subr.mxu0 0.0
        %377 = vmatpush1.msra.mxu0 0.0
        %378 = vmatprep.subr.mxu0 0.0
        %379 = vmatpush1.msra.mxu0 0.0
        %380 = vmatprep.subr.mxu0 0.0
        %381 = vmatpush1.msra.mxu0 0.0
        %382 = vmatprep.subr.mxu0 0.0
        %383 = vmatpush1.msra.mxu0 0.0
        %384 = vmatprep.subr.mxu0 0.0
        %385 = vmatpush1.msra.mxu0 0.0
        %386 = vmatprep.subr.mxu0 0.0
        %387 = vmatpush1.msra.mxu0 0.0
        %388 = vmatprep.subr.mxu0 0.0
        %389 = vmatpush1.msra.mxu0 0.0
        %390 = vmatprep.subr.mxu0 0.0
        %391 = vmatpush1.msra.mxu0 0.0
        %392 = vmatprep.subr.mxu0 0.0
        %393 = vmatpush1.msra.mxu0 0.0
        %394 = vmatprep.subr.mxu0 0.0
        %395 = vmatpush1.msra.mxu0 0.0
        %396 = vmatprep.subr.mxu0 0.0
        %397 = vmatpush1.msra.mxu0 0.0
        %398 = vmatprep.subr.mxu0 0.0
        %399 = vmatpush1.msra.mxu0 0.0
        %400 = vmatprep.subr.mxu0 0.0
        %401 = vmatpush1.msra.mxu0 0.0
        %402 = vmatprep.subr.mxu0 0.0
        %v403 = vand.u32 %v201, 4294901760
        %v404 = vsub.f32 %v201, %v403
        %v405 = vand.u32 %v404, 4294901760
        %v406 = vsub.f32 %v404, %v405
        %v407 = vand.u32 %v406, 4294901760
        %408 = vmatpush1.msra.mxu0 %v407
        %409 = vmatprep.subr.mxu0 0.0
        %v410 = vand.u32 %v200, 4294901760
        %v411 = vsub.f32 %v200, %v410
        %v412 = vand.u32 %v411, 4294901760
        %v413 = vsub.f32 %v411, %v412
        %v414 = vand.u32 %v413, 4294901760
        %415 = vmatpush1.msra.mxu0 %v414
        %416 = vmatprep.subr.mxu0 0.0
        %417 = vmatpush2.msra.mxu0 0.0
        %418 = vmatprep.subr.mxu0 0.0
        %419 = vmatpush2.msra.mxu0 0.0
        %420 = vmatprep.subr.mxu0 0.0
        %421 = vmatpush2.msra.mxu0 0.0
        %422 = vmatprep.subr.mxu0 0.0
        %423 = vmatpush2.msra.mxu0 0.0
        %424 = vmatprep.subr.mxu0 0.0
        %425 = vmatpush2.msra.mxu0 0.0
        %426 = vmatprep.subr.mxu0 0.0
        %427 = vmatpush2.msra.mxu0 0.0
        %428 = vmatprep.subr.mxu0 0.0
        %429 = vmatpush2.msra.mxu0 0.0
        %430 = vmatprep.subr.mxu0 0.0
        %431 = vmatpush2.msra.mxu0 0.0
        %432 = vmatprep.subr.mxu0 0.0
        %433 = vmatpush2.msra.mxu0 0.0
        %434 = vmatprep.subr.mxu0 0.0
        %435 = vmatpush2.msra.mxu0 0.0
        %436 = vmatprep.subr.mxu0 0.0
        %437 = vmatpush2.msra.mxu0 0.0
        %438 = vmatprep.subr.mxu0 0.0
        %439 = vmatpush2.msra.mxu0 0.0
        %440 = vmatprep.subr.mxu0 0.0
        %441 = vmatpush2.msra.mxu0 0.0
        %442 = vmatprep.subr.mxu0 0.0
        %443 = vmatpush2.msra.mxu0 0.0
        %444 = vmatprep.subr.mxu0 0.0
        %445 = vmatpush2.msra.mxu0 0.0
        %446 = vmatprep.subr.mxu0 0.0
        %447 = vmatpush2.msra.mxu0 0.0
        %448 = vmatprep.mubr.f32.mxu0 0.0
        %v449 = vand.u32 %v204, 4294901760
        %450 = vmatmul.mubr.f32.gmra.mxu0 %v449
        %v451 = vpop.f32.mrf.mxu0
        %v452 = vadd.f32 %v301, %v451
        %v453 = vpop.f32.mrf.mxu0
        %454 = vmatprep.mubr.f32.mxu0 0.0
        %v455 = vand.u32 %v207, 4294901760
        %456 = vmatmul.mubr.f32.gmra.mxu0 %v455
        %v457 = vpop.f32.mrf.mxu0
        %v458 = vadd.f32 %v311, %v457
        %v459 = vpop.f32.mrf.mxu0
        %460 = vmatprep.mubr.f32.mxu0 0.0
        %v461 = vand.u32 %v210, 4294901760
        %462 = vmatmul.mubr.f32.gmra.mxu0 %v461
        %v463 = vpop.f32.mrf.mxu0
        %v464 = vadd.f32 %v321, %v463
        %v465 = vpop.f32.mrf.mxu0
        %466 = vmatprep.mubr.f32.mxu0 0.0
        %v467 = vand.u32 %v213, 4294901760
        %468 = vmatmul.mubr.f32.gmra.mxu0 %v467
        %v469 = vpop.f32.mrf.mxu0
        %v470 = vadd.f32 %v331, %v469
        %v471 = vpop.f32.mrf.mxu0
        %472 = vmatprep.mubr.f32.mxu0 0.0
        %v473 = vand.u32 %v216, 4294901760
        %474 = vmatmul.mubr.f32.gmra.mxu0 %v473
        %v475 = vpop.f32.mrf.mxu0
        %v476 = vadd.f32 %v341, %v475
        %v477 = vpop.f32.mrf.mxu0
        %478 = vmatprep.mubr.f32.mxu0 0.0
        %v479 = vand.u32 %v219, 4294901760
        %480 = vmatmul.mubr.f32.gmra.mxu0 %v479
        %v481 = vpop.f32.mrf.mxu0
        %v482 = vadd.f32 %v351, %v481
        %v483 = vpop.f32.mrf.mxu0
        %484 = vmatprep.mubr.f32.mxu0 0.0
        %v485 = vand.u32 %v222, 4294901760
        %486 = vmatmul.mubr.f32.gmra.mxu0 %v485
        %v487 = vpop.f32.mrf.mxu0
        %v488 = vadd.f32 %v361, %v487
        %v489 = vpop.f32.mrf.mxu0
        %490 = vmatprep.mubr.f32.mxu0 0.0
        %v491 = vand.u32 %v225, 4294901760
        %492 = vmatmul.mubr.f32.gmra.mxu0 %v491
        %v493 = vpop.f32.mrf.mxu0
        %v494 = vadd.f32 %v371, %v493
        %v495 = vpop.f32.mrf.mxu0
        %496 = vdwg.mxu0
        %497 = vmatprep.subr.mxu0 0.0
        %498 = vmatpush1.msra.mxu0 0.0
        %499 = vmatprep.subr.mxu0 0.0
        %500 = vmatpush1.msra.mxu0 0.0
        %501 = vmatprep.subr.mxu0 0.0
        %502 = vmatpush1.msra.mxu0 0.0
        %503 = vmatprep.subr.mxu0 0.0
        %504 = vmatpush1.msra.mxu0 0.0
        %505 = vmatprep.subr.mxu0 0.0
        %506 = vmatpush1.msra.mxu0 0.0
        %507 = vmatprep.subr.mxu0 0.0
        %508 = vmatpush1.msra.mxu0 0.0
        %509 = vmatprep.subr.mxu0 0.0
        %510 = vmatpush1.msra.mxu0 0.0
        %511 = vmatprep.subr.mxu0 0.0
        %512 = vmatpush1.msra.mxu0 0.0
        %513 = vmatprep.subr.mxu0 0.0
        %514 = vmatpush1.msra.mxu0 0.0
        %515 = vmatprep.subr.mxu0 0.0
        %516 = vmatpush1.msra.mxu0 0.0
        %517 = vmatprep.subr.mxu0 0.0
        %518 = vmatpush1.msra.mxu0 0.0
        %519 = vmatprep.subr.mxu0 0.0
        %520 = vmatpush1.msra.mxu0 0.0
        %521 = vmatprep.subr.mxu0 0.0
        %522 = vmatpush1.msra.mxu0 0.0
        %523 = vmatprep.subr.mxu0 0.0
        %524 = vmatpush1.msra.mxu0 0.0
        %525 = vmatprep.subr.mxu0 0.0
        %v526 = vand.u32 %v201, 4294901760
        %v527 = vsub.f32 %v201, %v526
        %528 = vmatpush1.msra.mxu0 %v527
        %529 = vmatprep.subr.mxu0 0.0
        %v530 = vand.u32 %v200, 4294901760
        %v531 = vsub.f32 %v200, %v530
        %532 = vmatpush1.msra.mxu0 %v531
        %533 = vmatprep.subr.mxu0 0.0
        %534 = vmatpush2.msra.mxu0 0.0
        %535 = vmatprep.subr.mxu0 0.0
        %536 = vmatpush2.msra.mxu0 0.0
        %537 = vmatprep.subr.mxu0 0.0
        %538 = vmatpush2.msra.mxu0 0.0
        %539 = vmatprep.subr.mxu0 0.0
        %540 = vmatpush2.msra.mxu0 0.0
        %541 = vmatprep.subr.mxu0 0.0
        %542 = vmatpush2.msra.mxu0 0.0
        %543 = vmatprep.subr.mxu0 0.0
        %544 = vmatpush2.msra.mxu0 0.0
        %545 = vmatprep.subr.mxu0 0.0
        %546 = vmatpush2.msra.mxu0 0.0
        %547 = vmatprep.subr.mxu0 0.0
        %548 = vmatpush2.msra.mxu0 0.0
        %549 = vmatprep.subr.mxu0 0.0
        %550 = vmatpush2.msra.mxu0 0.0
        %551 = vmatprep.subr.mxu0 0.0
        %552 = vmatpush2.msra.mxu0 0.0
        %553 = vmatprep.subr.mxu0 0.0
        %554 = vmatpush2.msra.mxu0 0.0
        %555 = vmatprep.subr.mxu0 0.0
        %556 = vmatpush2.msra.mxu0 0.0
        %557 = vmatprep.subr.mxu0 0.0
        %558 = vmatpush2.msra.mxu0 0.0
        %559 = vmatprep.subr.mxu0 0.0
        %560 = vmatpush2.msra.mxu0 0.0
        %561 = vmatprep.subr.mxu0 0.0
        %562 = vmatpush2.msra.mxu0 0.0
        %563 = vmatprep.subr.mxu0 0.0
        %564 = vmatpush2.msra.mxu0 0.0
        %565 = vmatprep.mubr.f32.mxu0 0.0
        %v566 = vand.u32 %v204, 4294901760
        %v567 = vsub.f32 %v204, %v566
        %568 = vmatmul.mubr.f32.gmra.mxu0 %v567
        %v569 = vpop.f32.mrf.mxu0
        %v570 = vadd.f32 %v452, %v569
        %v571 = vpop.f32.mrf.mxu0
        %572 = vmatprep.mubr.f32.mxu0 0.0
        %v573 = vand.u32 %v207, 4294901760
        %v574 = vsub.f32 %v207, %v573
        %575 = vmatmul.mubr.f32.gmra.mxu0 %v574
        %v576 = vpop.f32.mrf.mxu0
        %v577 = vadd.f32 %v458, %v576
        %v578 = vpop.f32.mrf.mxu0
        %579 = vmatprep.mubr.f32.mxu0 0.0
        %v580 = vand.u32 %v210, 4294901760
        %v581 = vsub.f32 %v210, %v580
        %582 = vmatmul.mubr.f32.gmra.mxu0 %v581
        %v583 = vpop.f32.mrf.mxu0
        %v584 = vadd.f32 %v464, %v583
        %v585 = vpop.f32.mrf.mxu0
        %586 = vmatprep.mubr.f32.mxu0 0.0
        %v587 = vand.u32 %v213, 4294901760
        %v588 = vsub.f32 %v213, %v587
        %589 = vmatmul.mubr.f32.gmra.mxu0 %v588
        %v590 = vpop.f32.mrf.mxu0
        %v591 = vadd.f32 %v470, %v590
        %v592 = vpop.f32.mrf.mxu0
        %593 = vmatprep.mubr.f32.mxu0 0.0
        %v594 = vand.u32 %v216, 4294901760
        %v595 = vsub.f32 %v216, %v594
        %596 = vmatmul.mubr.f32.gmra.mxu0 %v595
        %v597 = vpop.f32.mrf.mxu0
        %v598 = vadd.f32 %v476, %v597
        %v599 = vpop.f32.mrf.mxu0
        %600 = vmatprep.mubr.f32.mxu0 0.0
        %v601 = vand.u32 %v219, 4294901760
        %v602 = vsub.f32 %v219, %v601
        %603 = vmatmul.mubr.f32.gmra.mxu0 %v602
        %v604 = vpop.f32.mrf.mxu0
        %v605 = vadd.f32 %v482, %v604
        %v606 = vpop.f32.mrf.mxu0
        %607 = vmatprep.mubr.f32.mxu0 0.0
        %v608 = vand.u32 %v222, 4294901760
        %v609 = vsub.f32 %v222, %v608
        %610 = vmatmul.mubr.f32.gmra.mxu0 %v609
        %v611 = vpop.f32.mrf.mxu0
        %v612 = vadd.f32 %v488, %v611
        %v613 = vpop.f32.mrf.mxu0
        %614 = vmatprep.mubr.f32.mxu0 0.0
        %v615 = vand.u32 %v225, 4294901760
        %v616 = vsub.f32 %v225, %v615
        %617 = vmatmul.mubr.f32.gmra.mxu0 %v616
        %v618 = vpop.f32.mrf.mxu0
        %v619 = vadd.f32 %v494, %v618
        %v620 = vpop.f32.mrf.mxu0
        %621 = vdwg.mxu0
        %622 = vmatprep.subr.mxu0 0.0
        %623 = vmatpush1.msra.mxu0 0.0
        %624 = vmatprep.subr.mxu0 0.0
        %625 = vmatpush1.msra.mxu0 0.0
        %626 = vmatprep.subr.mxu0 0.0
        %627 = vmatpush1.msra.mxu0 0.0
        %628 = vmatprep.subr.mxu0 0.0
        %629 = vmatpush1.msra.mxu0 0.0
        %630 = vmatprep.subr.mxu0 0.0
        %631 = vmatpush1.msra.mxu0 0.0
        %632 = vmatprep.subr.mxu0 0.0
        %633 = vmatpush1.msra.mxu0 0.0
        %634 = vmatprep.subr.mxu0 0.0
        %635 = vmatpush1.msra.mxu0 0.0
        %636 = vmatprep.subr.mxu0 0.0
        %637 = vmatpush1.msra.mxu0 0.0
        %638 = vmatprep.subr.mxu0 0.0
        %639 = vmatpush1.msra.mxu0 0.0
        %640 = vmatprep.subr.mxu0 0.0
        %641 = vmatpush1.msra.mxu0 0.0
        %642 = vmatprep.subr.mxu0 0.0
        %643 = vmatpush1.msra.mxu0 0.0
        %644 = vmatprep.subr.mxu0 0.0
        %645 = vmatpush1.msra.mxu0 0.0
        %646 = vmatprep.subr.mxu0 0.0
        %647 = vmatpush1.msra.mxu0 0.0
        %648 = vmatprep.subr.mxu0 0.0
        %649 = vmatpush1.msra.mxu0 0.0
        %650 = vmatprep.subr.mxu0 0.0
        %v651 = vand.u32 %v201, 4294901760
        %652 = vmatpush1.msra.mxu0 %v651
        %653 = vmatprep.subr.mxu0 0.0
        %v654 = vand.u32 %v200, 4294901760
        %655 = vmatpush1.msra.mxu0 %v654
        %656 = vmatprep.subr.mxu0 0.0
        %657 = vmatpush2.msra.mxu0 0.0
        %658 = vmatprep.subr.mxu0 0.0
        %659 = vmatpush2.msra.mxu0 0.0
        %660 = vmatprep.subr.mxu0 0.0
        %661 = vmatpush2.msra.mxu0 0.0
        %662 = vmatprep.subr.mxu0 0.0
        %663 = vmatpush2.msra.mxu0 0.0
        %664 = vmatprep.subr.mxu0 0.0
        %665 = vmatpush2.msra.mxu0 0.0
        %666 = vmatprep.subr.mxu0 0.0
        %667 = vmatpush2.msra.mxu0 0.0
        %668 = vmatprep.subr.mxu0 0.0
        %669 = vmatpush2.msra.mxu0 0.0
        %670 = vmatprep.subr.mxu0 0.0
        %671 = vmatpush2.msra.mxu0 0.0
        %672 = vmatprep.subr.mxu0 0.0
        %673 = vmatpush2.msra.mxu0 0.0
        %674 = vmatprep.subr.mxu0 0.0
        %675 = vmatpush2.msra.mxu0 0.0
        %676 = vmatprep.subr.mxu0 0.0
        %677 = vmatpush2.msra.mxu0 0.0
        %678 = vmatprep.subr.mxu0 0.0
        %679 = vmatpush2.msra.mxu0 0.0
        %680 = vmatprep.subr.mxu0 0.0
        %681 = vmatpush2.msra.mxu0 0.0
        %682 = vmatprep.subr.mxu0 0.0
        %683 = vmatpush2.msra.mxu0 0.0
        %684 = vmatprep.subr.mxu0 0.0
        %685 = vmatpush2.msra.mxu0 0.0
        %686 = vmatprep.subr.mxu0 0.0
        %687 = vmatpush2.msra.mxu0 0.0
        %688 = vmatprep.mubr.f32.mxu0 0.0
        %v689 = vand.u32 %v204, 4294901760
        %v690 = vsub.f32 %v204, %v689
        %v691 = vand.u32 %v690, 4294901760
        %692 = vmatmul.mubr.f32.gmra.mxu0 %v691
        %v693 = vpop.f32.mrf.mxu0
        %v694 = vadd.f32 %v570, %v693
        %v695 = vpop.f32.mrf.mxu0
        %696 = vmatprep.mubr.f32.mxu0 0.0
        %v697 = vand.u32 %v207, 4294901760
        %v698 = vsub.f32 %v207, %v697
        %v699 = vand.u32 %v698, 4294901760
        %700 = vmatmul.mubr.f32.gmra.mxu0 %v699
        %v701 = vpop.f32.mrf.mxu0
        %v702 = vadd.f32 %v577, %v701
        %v703 = vpop.f32.mrf.mxu0
        %704 = vmatprep.mubr.f32.mxu0 0.0
        %v705 = vand.u32 %v210, 4294901760
        %v706 = vsub.f32 %v210, %v705
        %v707 = vand.u32 %v706, 4294901760
        %708 = vmatmul.mubr.f32.gmra.mxu0 %v707
        %v709 = vpop.f32.mrf.mxu0
        %v710 = vadd.f32 %v584, %v709
        %v711 = vpop.f32.mrf.mxu0
        %712 = vmatprep.mubr.f32.mxu0 0.0
        %v713 = vand.u32 %v213, 4294901760
        %v714 = vsub.f32 %v213, %v713
        %v715 = vand.u32 %v714, 4294901760
        %716 = vmatmul.mubr.f32.gmra.mxu0 %v715
        %v717 = vpop.f32.mrf.mxu0
        %v718 = vadd.f32 %v591, %v717
        %v719 = vpop.f32.mrf.mxu0
        %720 = vmatprep.mubr.f32.mxu0 0.0
        %v721 = vand.u32 %v216, 4294901760
        %v722 = vsub.f32 %v216, %v721
        %v723 = vand.u32 %v722, 4294901760
        %724 = vmatmul.mubr.f32.gmra.mxu0 %v723
        %v725 = vpop.f32.mrf.mxu0
        %v726 = vadd.f32 %v598, %v725
        %v727 = vpop.f32.mrf.mxu0
        %728 = vmatprep.mubr.f32.mxu0 0.0
        %v729 = vand.u32 %v219, 4294901760
        %v730 = vsub.f32 %v219, %v729
        %v731 = vand.u32 %v730, 4294901760
        %732 = vmatmul.mubr.f32.gmra.mxu0 %v731
        %v733 = vpop.f32.mrf.mxu0
        %v734 = vadd.f32 %v605, %v733
        %v735 = vpop.f32.mrf.mxu0
        %736 = vmatprep.mubr.f32.mxu0 0.0
        %v737 = vand.u32 %v222, 4294901760
        %v738 = vsub.f32 %v222, %v737
        %v739 = vand.u32 %v738, 4294901760
        %740 = vmatmul.mubr.f32.gmra.mxu0 %v739
        %v741 = vpop.f32.mrf.mxu0
        %v742 = vadd.f32 %v612, %v741
        %v743 = vpop.f32.mrf.mxu0
        %744 = vmatprep.mubr.f32.mxu0 0.0
        %v745 = vand.u32 %v225, 4294901760
        %v746 = vsub.f32 %v225, %v745
        %v747 = vand.u32 %v746, 4294901760
        %748 = vmatmul.mubr.f32.gmra.mxu0 %v747
        %v749 = vpop.f32.mrf.mxu0
        %v750 = vadd.f32 %v619, %v749
        %v751 = vpop.f32.mrf.mxu0
        %752 = vdwg.mxu0
        %753 = vmatprep.subr.mxu0 0.0
        %754 = vmatpush1.msra.mxu0 0.0
        %755 = vmatprep.subr.mxu0 0.0
        %756 = vmatpush1.msra.mxu0 0.0
        %757 = vmatprep.subr.mxu0 0.0
        %758 = vmatpush1.msra.mxu0 0.0
        %759 = vmatprep.subr.mxu0 0.0
        %760 = vmatpush1.msra.mxu0 0.0
        %761 = vmatprep.subr.mxu0 0.0
        %762 = vmatpush1.msra.mxu0 0.0
        %763 = vmatprep.subr.mxu0 0.0
        %764 = vmatpush1.msra.mxu0 0.0
        %765 = vmatprep.subr.mxu0 0.0
        %766 = vmatpush1.msra.mxu0 0.0
        %767 = vmatprep.subr.mxu0 0.0
        %768 = vmatpush1.msra.mxu0 0.0
        %769 = vmatprep.subr.mxu0 0.0
        %770 = vmatpush1.msra.mxu0 0.0
        %771 = vmatprep.subr.mxu0 0.0
        %772 = vmatpush1.msra.mxu0 0.0
        %773 = vmatprep.subr.mxu0 0.0
        %774 = vmatpush1.msra.mxu0 0.0
        %775 = vmatprep.subr.mxu0 0.0
        %776 = vmatpush1.msra.mxu0 0.0
        %777 = vmatprep.subr.mxu0 0.0
        %778 = vmatpush1.msra.mxu0 0.0
        %779 = vmatprep.subr.mxu0 0.0
        %780 = vmatpush1.msra.mxu0 0.0
        %781 = vmatprep.subr.mxu0 0.0
        %v782 = vand.u32 %v201, 4294901760
        %v783 = vsub.f32 %v201, %v782
        %v784 = vand.u32 %v783, 4294901760
        %785 = vmatpush1.msra.mxu0 %v784
        %786 = vmatprep.subr.mxu0 0.0
        %v787 = vand.u32 %v200, 4294901760
        %v788 = vsub.f32 %v200, %v787
        %v789 = vand.u32 %v788, 4294901760
        %790 = vmatpush1.msra.mxu0 %v789
        %791 = vmatprep.subr.mxu0 0.0
        %792 = vmatpush2.msra.mxu0 0.0
        %793 = vmatprep.subr.mxu0 0.0
        %794 = vmatpush2.msra.mxu0 0.0
        %795 = vmatprep.subr.mxu0 0.0
        %796 = vmatpush2.msra.mxu0 0.0
        %797 = vmatprep.subr.mxu0 0.0
        %798 = vmatpush2.msra.mxu0 0.0
        %799 = vmatprep.subr.mxu0 0.0
        %800 = vmatpush2.msra.mxu0 0.0
        %801 = vmatprep.subr.mxu0 0.0
        %802 = vmatpush2.msra.mxu0 0.0
        %803 = vmatprep.subr.mxu0 0.0
        %804 = vmatpush2.msra.mxu0 0.0
        %805 = vmatprep.subr.mxu0 0.0
        %806 = vmatpush2.msra.mxu0 0.0
        %807 = vmatprep.subr.mxu0 0.0
        %808 = vmatpush2.msra.mxu0 0.0
        %809 = vmatprep.subr.mxu0 0.0
        %810 = vmatpush2.msra.mxu0 0.0
        %811 = vmatprep.subr.mxu0 0.0
        %812 = vmatpush2.msra.mxu0 0.0
        %813 = vmatprep.subr.mxu0 0.0
        %814 = vmatpush2.msra.mxu0 0.0
        %815 = vmatprep.subr.mxu0 0.0
        %816 = vmatpush2.msra.mxu0 0.0
        %817 = vmatprep.subr.mxu0 0.0
        %818 = vmatpush2.msra.mxu0 0.0
        %819 = vmatprep.subr.mxu0 0.0
        %820 = vmatpush2.msra.mxu0 0.0
        %821 = vmatprep.subr.mxu0 0.0
        %822 = vmatpush2.msra.mxu0 0.0
        %823 = vmatprep.mubr.f32.mxu0 0.0
        %v824 = vand.u32 %v204, 4294901760
        %825 = vmatmul.mubr.f32.gmra.mxu0 %v824
        %v826 = vpop.f32.mrf.mxu0
        %v827 = vadd.f32 %v694, %v826
        %v828 = vpop.f32.mrf.mxu0
        %829 = vmatprep.mubr.f32.mxu0 0.0
        %v830 = vand.u32 %v207, 4294901760
        %831 = vmatmul.mubr.f32.gmra.mxu0 %v830
        %v832 = vpop.f32.mrf.mxu0
        %v833 = vadd.f32 %v702, %v832
        %v834 = vpop.f32.mrf.mxu0
        %835 = vmatprep.mubr.f32.mxu0 0.0
        %v836 = vand.u32 %v210, 4294901760
        %837 = vmatmul.mubr.f32.gmra.mxu0 %v836
        %v838 = vpop.f32.mrf.mxu0
        %v839 = vadd.f32 %v710, %v838
        %v840 = vpop.f32.mrf.mxu0
        %841 = vmatprep.mubr.f32.mxu0 0.0
        %v842 = vand.u32 %v213, 4294901760
        %843 = vmatmul.mubr.f32.gmra.mxu0 %v842
        %v844 = vpop.f32.mrf.mxu0
        %v845 = vadd.f32 %v718, %v844
        %v846 = vpop.f32.mrf.mxu0
        %847 = vmatprep.mubr.f32.mxu0 0.0
        %v848 = vand.u32 %v216, 4294901760
        %849 = vmatmul.mubr.f32.gmra.mxu0 %v848
        %v850 = vpop.f32.mrf.mxu0
        %v851 = vadd.f32 %v726, %v850
        %v852 = vpop.f32.mrf.mxu0
        %853 = vmatprep.mubr.f32.mxu0 0.0
        %v854 = vand.u32 %v219, 4294901760
        %855 = vmatmul.mubr.f32.gmra.mxu0 %v854
        %v856 = vpop.f32.mrf.mxu0
        %v857 = vadd.f32 %v734, %v856
        %v858 = vpop.f32.mrf.mxu0
        %859 = vmatprep.mubr.f32.mxu0 0.0
        %v860 = vand.u32 %v222, 4294901760
        %861 = vmatmul.mubr.f32.gmra.mxu0 %v860
        %v862 = vpop.f32.mrf.mxu0
        %v863 = vadd.f32 %v742, %v862
        %v864 = vpop.f32.mrf.mxu0
        %865 = vmatprep.mubr.f32.mxu0 0.0
        %v866 = vand.u32 %v225, 4294901760
        %867 = vmatmul.mubr.f32.gmra.mxu0 %v866
        %v868 = vpop.f32.mrf.mxu0
        %v869 = vadd.f32 %v750, %v868
        %v870 = vpop.f32.mrf.mxu0
        %871 = vdwg.mxu0
        %872 = vmatprep.subr.mxu0 0.0
        %873 = vmatpush1.msra.mxu0 0.0
        %874 = vmatprep.subr.mxu0 0.0
        %875 = vmatpush1.msra.mxu0 0.0
        %876 = vmatprep.subr.mxu0 0.0
        %877 = vmatpush1.msra.mxu0 0.0
        %878 = vmatprep.subr.mxu0 0.0
        %879 = vmatpush1.msra.mxu0 0.0
        %880 = vmatprep.subr.mxu0 0.0
        %881 = vmatpush1.msra.mxu0 0.0
        %882 = vmatprep.subr.mxu0 0.0
        %883 = vmatpush1.msra.mxu0 0.0
        %884 = vmatprep.subr.mxu0 0.0
        %885 = vmatpush1.msra.mxu0 0.0
        %886 = vmatprep.subr.mxu0 0.0
        %887 = vmatpush1.msra.mxu0 0.0
        %888 = vmatprep.subr.mxu0 0.0
        %889 = vmatpush1.msra.mxu0 0.0
        %890 = vmatprep.subr.mxu0 0.0
        %891 = vmatpush1.msra.mxu0 0.0
        %892 = vmatprep.subr.mxu0 0.0
        %893 = vmatpush1.msra.mxu0 0.0
        %894 = vmatprep.subr.mxu0 0.0
        %895 = vmatpush1.msra.mxu0 0.0
        %896 = vmatprep.subr.mxu0 0.0
        %897 = vmatpush1.msra.mxu0 0.0
        %898 = vmatprep.subr.mxu0 0.0
        %899 = vmatpush1.msra.mxu0 0.0
        %900 = vmatprep.subr.mxu0 0.0
        %v901 = vand.u32 %v201, 4294901760
        %902 = vmatpush1.msra.mxu0 %v901
        %903 = vmatprep.subr.mxu0 0.0
        %v904 = vand.u32 %v200, 4294901760
        %905 = vmatpush1.msra.mxu0 %v904
        %906 = vmatprep.subr.mxu0 0.0
        %907 = vmatpush2.msra.mxu0 0.0
        %908 = vmatprep.subr.mxu0 0.0
        %909 = vmatpush2.msra.mxu0 0.0
        %910 = vmatprep.subr.mxu0 0.0
        %911 = vmatpush2.msra.mxu0 0.0
        %912 = vmatprep.subr.mxu0 0.0
        %913 = vmatpush2.msra.mxu0 0.0
        %914 = vmatprep.subr.mxu0 0.0
        %915 = vmatpush2.msra.mxu0 0.0
        %916 = vmatprep.subr.mxu0 0.0
        %917 = vmatpush2.msra.mxu0 0.0
        %918 = vmatprep.subr.mxu0 0.0
        %919 = vmatpush2.msra.mxu0 0.0
        %920 = vmatprep.subr.mxu0 0.0
        %921 = vmatpush2.msra.mxu0 0.0
        %922 = vmatprep.subr.mxu0 0.0
        %923 = vmatpush2.msra.mxu0 0.0
        %924 = vmatprep.subr.mxu0 0.0
        %925 = vmatpush2.msra.mxu0 0.0
        %926 = vmatprep.subr.mxu0 0.0
        %927 = vmatpush2.msra.mxu0 0.0
        %928 = vmatprep.subr.mxu0 0.0
        %929 = vmatpush2.msra.mxu0 0.0
        %930 = vmatprep.subr.mxu0 0.0
        %931 = vmatpush2.msra.mxu0 0.0
        %932 = vmatprep.subr.mxu0 0.0
        %933 = vmatpush2.msra.mxu0 0.0
        %934 = vmatprep.subr.mxu0 0.0
        %935 = vmatpush2.msra.mxu0 0.0
        %936 = vmatprep.subr.mxu0 0.0
        %937 = vmatpush2.msra.mxu0 0.0
        %938 = vmatprep.mubr.f32.mxu0 0.0
        %v939 = vand.u32 %v204, 4294901760
        %940 = vmatmul.mubr.f32.gmra.mxu0 %v939
        %v941 = vpop.f32.mrf.mxu0
        %v942 = vadd.f32 %v827, %v941
        %v943 = vpop.f32.mrf.mxu0
        %944 = vmatprep.mubr.f32.mxu0 0.0
        %v945 = vand.u32 %v207, 4294901760
        %946 = vmatmul.mubr.f32.gmra.mxu0 %v945
        %v947 = vpop.f32.mrf.mxu0
        %v948 = vadd.f32 %v833, %v947
        %v949 = vpop.f32.mrf.mxu0
        %950 = vmatprep.mubr.f32.mxu0 0.0
        %v951 = vand.u32 %v210, 4294901760
        %952 = vmatmul.mubr.f32.gmra.mxu0 %v951
        %v953 = vpop.f32.mrf.mxu0
        %v954 = vadd.f32 %v839, %v953
        %v955 = vpop.f32.mrf.mxu0
        %956 = vmatprep.mubr.f32.mxu0 0.0
        %v957 = vand.u32 %v213, 4294901760
        %958 = vmatmul.mubr.f32.gmra.mxu0 %v957
        %v959 = vpop.f32.mrf.mxu0
        %v960 = vadd.f32 %v845, %v959
        %v961 = vpop.f32.mrf.mxu0
        %962 = vmatprep.mubr.f32.mxu0 0.0
        %v963 = vand.u32 %v216, 4294901760
        %964 = vmatmul.mubr.f32.gmra.mxu0 %v963
        %v965 = vpop.f32.mrf.mxu0
        %v966 = vadd.f32 %v851, %v965
        %v967 = vpop.f32.mrf.mxu0
        %968 = vmatprep.mubr.f32.mxu0 0.0
        %v969 = vand.u32 %v219, 4294901760
        %970 = vmatmul.mubr.f32.gmra.mxu0 %v969
        %v971 = vpop.f32.mrf.mxu0
        %v972 = vadd.f32 %v857, %v971
        %v973 = vpop.f32.mrf.mxu0
        %974 = vmatprep.mubr.f32.mxu0 0.0
        %v975 = vand.u32 %v222, 4294901760
        %976 = vmatmul.mubr.f32.gmra.mxu0 %v975
        %v977 = vpop.f32.mrf.mxu0
        %v978 = vadd.f32 %v863, %v977
        %v979 = vpop.f32.mrf.mxu0
        %980 = vmatprep.mubr.f32.mxu0 0.0
        %v981 = vand.u32 %v225, 4294901760
        %982 = vmatmul.mubr.f32.gmra.mxu0 %v981
        %v983 = vpop.f32.mrf.mxu0
        %v984 = vadd.f32 %v869, %v983
        %v985 = vpop.f32.mrf.mxu0
        %986 = vdwg.mxu0
        %vm987 = vcmask 523264
        %988 = vst.msk [vmem:[%s190] sm:$0xff] %vm987, %v942
        %989 = vst.msk [vmem:[%s190 + $0x8] sm:$0xff] %vm987, %v948
        %990 = vst.msk [vmem:[%s190 + $0x10] sm:$0xff] %vm987, %v954
        %991 = vst.msk [vmem:[%s190 + $0x18] sm:$0xff] %vm987, %v960
        %992 = vst.msk [vmem:[%s190 + $0x20] sm:$0xff] %vm987, %v966
        %993 = vst.msk [vmem:[%s190 + $0x28] sm:$0xff] %vm987, %v972
        %994 = vst.msk [vmem:[%s190 + $0x30] sm:$0xff] %vm987, %v978
        %995 = vst.msk [vmem:[%s190 + $0x38] sm:$0xff] %vm987, %v984
        %s996 = smul.u32 8, %s21
        %p997 = scmp.lt.s32.totalorder %s20, 1
        %s998 = scalar_select %p997, %s20, 1
        %p999 = scmp.lt.s32.totalorder %s996, 7
        %s1000 = scalar_select %p999, %s996, 7
        %s1001 = smul.addr %s998, 8
        %s1002 = sadd.s32 %s1000, %s1001
        %s1003 = smul.addr %s1002, 8
        %s1004 = scalar_lea.vmem %s2, %s1003
        // Predicated region
        $region33: #{upsample_nearest_2x.1} parent=27 // pred_check
          %p1005 = pneg %p97
        $region34: #{upsample_nearest_2x.1} parent=27 // pred_check_branch
          %1007 = sbr.rel (%p1005) target = $region36
        $region35: #{upsample_nearest_2x.1} parent=27 // pred_region
          %s1008 = smul.u32 8, %s21
        $region36: #{upsample_nearest_2x.1} parent=27 // pred_fallthru
          _
      $region28: #{upsample_nearest_2x.1} parent=5 // pred_fallthru
        _
      %p1009 = scmp.le.s32.totalorder 2, %s11
      // Predicated region
      $region37: #{upsample_nearest_2x.1} parent=5 // pred_check
        %p1010 = pneg %p1009
      $region38: #{upsample_nearest_2x.1} parent=5 // pred_check_branch
        %1012 = sbr.rel (%p1010) target = $region40
      $region39: #{upsample_nearest_2x.1} parent=5 // pred_region
        %s1013 = ssub.s32 %s11, 2
        // Predicated region
        $region41: #{upsample_nearest_2x.1} parent=39 // pred_check
          %p1014 = pneg %p103
        $region42: #{upsample_nearest_2x.1} parent=39 // pred_check_branch
          %1016 = sbr.rel (%p1014) target = $region44
        $region43: #{upsample_nearest_2x.1} parent=39 // pred_region
          %s1017 = smul.u32 8, %s23
          %p1018 = scmp.lt.s32.totalorder %s22, 1
          %s1019 = scalar_select %p1018, %s22, 1
          %p1020 = scmp.lt.s32.totalorder %s1017, 7
          %s1021 = scalar_select %p1020, %s1017, 7
          %s1022 = smul.addr %s1019, 8
          %s1023 = sadd.s32 %s1021, %s1022
          %s1024 = smul.addr %s1023, 8
          %s1025 = scalar_lea.vmem %s2, %s1024
        $region44: #{upsample_nearest_2x.1} parent=39 // pred_fallthru
          _
      $region40: #{upsample_nearest_2x.1} parent=5 // pred_fallthru
        _
    $region6: #{upsample_nearest_2x.1} parent=1 // loop_footer
      %s15 = sadd.s32 1, %s11
    $region7: #{upsample_nearest_2x.1} parent=1 // loop_footer_branch
      %10 = sbr.rel target = $region3
    $region8: #{upsample_nearest_2x.1} parent=1 // loop_exit
      _
    %1026 = vsyncpa [#allocation3], 1
    %s1027 = scalar_lea.sflag [#allocation3], 1
    %1028 = vsyncpa %s1027, 1

</llo_original>
